<compile_context>
chip_gen: v5e
topology: v5e:2x2
jax: 0.10.0
libtpu: 0.0.40
codegen_flags: <defaults>
</compile_context>

<pallas_src>
import jax
import jax.numpy as jnp
from jax.experimental import pallas as pl
from jax.experimental.pallas import tpu as pltpu

LANE = 128


def _mlp_kernel(x_ref, w1_ref, b1_ref, w2_ref, b2_ref, o_ref):
    # hidden = tanh(x @ W1 + b1)   -- bf16 MXU inputs, f32 accumulate, f32 tanh
    h = jnp.tanh(
        jnp.dot(x_ref[...], w1_ref[...], preferred_element_type=jnp.float32)
        + b1_ref[...]
    )
    # logits = tanh(h @ W2 + b2)
    o_ref[...] = jnp.tanh(
        jnp.dot(h.astype(jnp.bfloat16), w2_ref[...],
                preferred_element_type=jnp.float32)
        + b2_ref[...]
    ).astype(o_ref.dtype)


def _round_up(n, m):
    return ((n + m - 1) // m) * m


def simple_nn_forward(x, w1, b1, w2, b2, *, tm=128):
    """x: [B, in_features]; w1: [in_features, hidden]; b1: [hidden];
    w2: [hidden, n_classes]; b2: [n_classes]  ->  logits [B, n_classes] (f32)."""
    B, in_features = x.shape
    hidden = w1.shape[1]
    n_classes = w2.shape[1]

    # Lane-dense padding of the feature dims (zero columns are exact no-ops:
    # tanh(0) = 0 and zero rows of W2 contribute nothing).
    hp = _round_up(hidden, LANE)
    cp = _round_up(n_classes, LANE)

    # Pad batch up to a multiple of the row tile.
    tm = max(8, tm)
    Bp = _round_up(B, tm)

    xb = jnp.zeros((Bp, in_features), jnp.bfloat16).at[:B].set(
        x.astype(jnp.bfloat16))
    w1p = jnp.zeros((in_features, hp), jnp.bfloat16).at[:, :hidden].set(
        w1.astype(jnp.bfloat16))
    b1p = jnp.zeros((1, hp), jnp.float32).at[:, :hidden].set(
        b1.reshape(1, hidden).astype(jnp.float32))
    w2p = jnp.zeros((hp, cp), jnp.bfloat16).at[:hidden, :n_classes].set(
        w2.astype(jnp.bfloat16))
    b2p = jnp.zeros((1, cp), jnp.float32).at[:, :n_classes].set(
        b2.reshape(1, n_classes).astype(jnp.float32))

    out = pl.pallas_call(
        _mlp_kernel,
        out_shape=jax.ShapeDtypeStruct((Bp, cp), jnp.float32),
        grid_spec=pltpu.PrefetchScalarGridSpec(
            num_scalar_prefetch=0,
            grid=(Bp // tm,),
            in_specs=[
                pl.BlockSpec((tm, in_features), lambda i: (i, 0)),   # x tile
                pl.BlockSpec((in_features, hp), lambda i: (0, 0)),   # W1 resident
                pl.BlockSpec((1, hp), lambda i: (0, 0)),             # b1 resident
                pl.BlockSpec((hp, cp), lambda i: (0, 0)),            # W2 resident
                pl.BlockSpec((1, cp), lambda i: (0, 0)),             # b2 resident
            ],
            out_specs=pl.BlockSpec((tm, cp), lambda i: (i, 0)),
        ),
        compiler_params=pltpu.CompilerParams(
            dimension_semantics=("parallel",),
        ),
    )(xb, w1p, b1p, w2p, b2p)

    return out[:B, :n_classes]


if __name__ == "__main__":
    # Shapes implied by the module: in_features=32, hidden=32, n_classes=16.
    batch, in_features, hidden, n_classes = 256, 32, 32, 16

    key = jax.random.PRNGKey(0)
    kx, k1, kb1, k2, kb2 = jax.random.split(key, 5)

    x = jax.random.normal(kx, (batch, in_features), dtype=jnp.float32)

    # Deterministic parameter init (PyTorch-style uniform bounds, synthetic values).
    bound1 = 1.0 / jnp.sqrt(in_features)
    w1 = jax.random.uniform(k1, (in_features, hidden), jnp.float32, -bound1, bound1)
    b1 = jax.random.uniform(kb1, (hidden,), jnp.float32, -bound1, bound1)

    bound2 = 1.0 / jnp.sqrt(hidden)
    w2 = jax.random.uniform(k2, (hidden, n_classes), jnp.float32, -bound2, bound2)
    b2 = jax.random.uniform(kb2, (n_classes,), jnp.float32, -bound2, bound2)

    logits = simple_nn_forward(x, w1, b1, w2, b2, tm=128)
    jax.block_until_ready(logits)
    assert logits.shape == (batch, n_classes)

    # Reference matched to the kernel's bf16-input / f32-accumulate precision.
    xb = x.astype(jnp.bfloat16).astype(jnp.float32)
    w1b = w1.astype(jnp.bfloat16).astype(jnp.float32)
    w2b = w2.astype(jnp.bfloat16).astype(jnp.float32)
    h_ref = jnp.tanh(xb @ w1b + b1[None, :])
    ref = jnp.tanh(h_ref.astype(jnp.bfloat16).astype(jnp.float32) @ w2b + b2[None, :])
    assert jnp.allclose(logits, ref, atol=5e-3, rtol=5e-3)

    # Loose check against the full-f32 math as well (bf16 quantization error only).
    ref_f32 = jnp.tanh(jnp.tanh(x @ w1 + b1[None, :]) @ w2 + b2[None, :])
    assert jnp.allclose(logits, ref_f32, atol=3e-2, rtol=3e-2)

    print("KERNEL_OK")
</pallas_src>

<mosaic_0001>
module attributes {stable_mosaic.version = 11 : i64} {
  func.func @_mlp_kernel(%arg0: i32, %arg1: memref<128x32xbf16, #tpu.memory_space<vmem>>, %arg2: memref<32x128xbf16, #tpu.memory_space<vmem>>, %arg3: memref<1x128xf32, #tpu.memory_space<vmem>>, %arg4: memref<128x128xbf16, #tpu.memory_space<vmem>>, %arg5: memref<1x128xf32, #tpu.memory_space<vmem>>, %arg6: memref<128x128xf32, #tpu.memory_space<vmem>>) attributes {dimension_semantics = [#tpu.dimension_semantics<parallel>], iteration_bounds = array<i64: 2>, scalar_prefetch = 0 : i64, scratch_operands = 0 : i64, tpu.core_type = #tpu.core_type<tc>, window_params = [{transform_indices = @transform_0, window_bounds = array<i64: 128, 32>}, {pipeline_mode = #tpu.pipeline_mode<synchronous>, transform_indices = @transform_1, window_bounds = array<i64: 32, 128>}, {pipeline_mode = #tpu.pipeline_mode<synchronous>, transform_indices = @transform_2, window_bounds = array<i64: 1, 128>}, {pipeline_mode = #tpu.pipeline_mode<synchronous>, transform_indices = @transform_3, window_bounds = array<i64: 128, 128>}, {pipeline_mode = #tpu.pipeline_mode<synchronous>, transform_indices = @transform_4, window_bounds = array<i64: 1, 128>}, {transform_indices = @transform_5, window_bounds = array<i64: 128, 128>}]} {
    %c0 = arith.constant 0 : index
    %c0_0 = arith.constant 0 : index
    %0 = vector.load %arg1[%c0, %c0_0] : memref<128x32xbf16, #tpu.memory_space<vmem>>, vector<128x32xbf16>
    %c0_1 = arith.constant 0 : index
    %c0_2 = arith.constant 0 : index
    %1 = vector.load %arg2[%c0_1, %c0_2] : memref<32x128xbf16, #tpu.memory_space<vmem>>, vector<32x128xbf16>
    %cst = arith.constant dense<0.000000e+00> : vector<128x128xf32>
    %2 = tpu.matmul %0, %1, %cst {dimension_numbers = #tpu.dot_dimension_numbers<[1], [0], [0], [1], [0, 0, 1, 1], [], []>} : vector<128x32xbf16>, vector<32x128xbf16>, vector<128x128xf32> -> vector<128x128xf32>
    %c0_3 = arith.constant 0 : index
    %c0_4 = arith.constant 0 : index
    %3 = vector.load %arg3[%c0_3, %c0_4] : memref<1x128xf32, #tpu.memory_space<vmem>>, vector<1x128xf32>
    %4 = vector.broadcast %3 : vector<1x128xf32> to vector<128x128xf32>
    %5 = arith.addf %2, %4 : vector<128x128xf32>
    %6 = math.tanh %5 : vector<128x128xf32>
    %7 = arith.truncf %6 : vector<128x128xf32> to vector<128x128xbf16>
    %c0_5 = arith.constant 0 : index
    %c0_6 = arith.constant 0 : index
    %8 = vector.load %arg4[%c0_5, %c0_6] : memref<128x128xbf16, #tpu.memory_space<vmem>>, vector<128x128xbf16>
    %cst_7 = arith.constant dense<0.000000e+00> : vector<128x128xf32>
    %9 = tpu.matmul %7, %8, %cst_7 {dimension_numbers = #tpu.dot_dimension_numbers<[1], [0], [0], [1], [0, 0, 1, 1], [], []>} : vector<128x128xbf16>, vector<128x128xbf16>, vector<128x128xf32> -> vector<128x128xf32>
    %c0_8 = arith.constant 0 : index
    %c0_9 = arith.constant 0 : index
    %10 = vector.load %arg5[%c0_8, %c0_9] : memref<1x128xf32, #tpu.memory_space<vmem>>, vector<1x128xf32>
    %11 = vector.broadcast %10 : vector<1x128xf32> to vector<128x128xf32>
    %12 = arith.addf %9, %11 : vector<128x128xf32>
    %13 = math.tanh %12 : vector<128x128xf32>
    %c0_10 = arith.constant 0 : index
    %c0_11 = arith.constant 0 : index
    %14 = vector.load %arg6[%c0_10, %c0_11] : memref<128x128xf32, #tpu.memory_space<vmem>>, vector<128x128xf32>
    tpu.vector_store %arg6[%c0_10, %c0_11], %13 {strides = array<i32>} : memref<128x128xf32, #tpu.memory_space<vmem>>, vector<128x128xf32>,
    return
  }
  func.func @transform_0(%arg0: i32) -> (i32, i32) {
    %c0_i32 = arith.constant 0 : i32
    %c0_i32_0 = arith.constant 0 : i32
    return %arg0, %c0_i32 : i32, i32
  }
  func.func @transform_1(%arg0: i32) -> (i32, i32) {
    %c0_i32 = arith.constant 0 : i32
    %c0_i32_0 = arith.constant 0 : i32
    %c0_i32_1 = arith.constant 0 : i32
    return %c0_i32, %c0_i32_0 : i32, i32
  }
  func.func @transform_2(%arg0: i32) -> (i32, i32) {
    %c0_i32 = arith.constant 0 : i32
    %c0_i32_0 = arith.constant 0 : i32
    %c0_i32_1 = arith.constant 0 : i32
    return %c0_i32, %c0_i32_0 : i32, i32
  }
  func.func @transform_3(%arg0: i32) -> (i32, i32) {
    %c0_i32 = arith.constant 0 : i32
    %c0_i32_0 = arith.constant 0 : i32
    %c0_i32_1 = arith.constant 0 : i32
    return %c0_i32, %c0_i32_0 : i32, i32
  }
  func.func @transform_4(%arg0: i32) -> (i32, i32) {
    %c0_i32 = arith.constant 0 : i32
    %c0_i32_0 = arith.constant 0 : i32
    %c0_i32_1 = arith.constant 0 : i32
    return %c0_i32, %c0_i32_0 : i32, i32
  }
  func.func @transform_5(%arg0: i32) -> (i32, i32) {
    %c0_i32 = arith.constant 0 : i32
    %c0_i32_0 = arith.constant 0 : i32
    return %arg0, %c0_i32 : i32, i32
  }
}

</mosaic_0001>

<llo_original>
// kernel: tpu_custom_call.1
$region0: #{tpu_custom_call.1}
  #allocation0 [shape = 'u32[]', space=smem, size = 0x4, offset = 0x4, fixed_abs, tag = 'smem constant byte address 0x4 - core index']
  #allocation1 [shape = 'u32[72,128]{1,0:T(1,128)}', space=vmem, size = 0x9000, scoped, tag = 'internal scratch']
  %s0 = inlined_call_operand.vmem [shape: bf16[256,32], index: 0, kind: input, shape index: {}]
  %s1 = inlined_call_operand.vmem [shape: bf16[32,128], index: 1, kind: input, shape index: {}]
  %s2 = inlined_call_operand.vmem [shape: f32[1,128], index: 2, kind: input, shape index: {}]
  %s3 = inlined_call_operand.vmem [shape: bf16[128,128], index: 3, kind: input, shape index: {}]
  %s4 = inlined_call_operand.vmem [shape: f32[1,128], index: 4, kind: input, shape index: {}]
  %s5 = inlined_call_operand.hbm [shape: f32[256,128], index: 5, kind: output, shape index: {}]
  %s6 = sld [smem:[#allocation0]]
  $region53: #{tpu_custom_call.1} parent=0
    _
  %s8 = ssub.s32 1, %s6
  %s9 = scalar_select 0, %s8, %s6
  $region1: #{tpu_custom_call.1} parent=0
    #allocation2 [shape = 'u8[131072]{0}', space=vmem, size = 0x20000, scoped, tag = 'output window, operand 0']
    #allocation3 [shape = 's32[2]{0}', space=sflag, size = 0x8, scoped, tag = 'scoped memory for tpu_custom_call.1']
    %10 = vsyncpa [#allocation3], 0
    %s11 = scalar_lea.sflag [#allocation3], 1
    %12 = vsyncpa %s11, 0
    loop: start=0, step=1, limit=4
    $region2: #{tpu_custom_call.1} parent=1 // loop_pre_header
      _
    $region3: #{tpu_custom_call.1} parent=1 // loop_header
      %s14 = sphi 0, %s18
      %p15 = scmp.ge.s32.totalorder %s14, 4
      %s24 = sphi 0, %s26
      %s27 = sphi 0, %s24
      %s28 = sphi 0, %s27
      %s44 = sphi 0, %s28
      %s48 = sphi 0, %s48
      %s50 = sphi 0, %s48
      %s51 = sphi 0, %s50
      %s65 = sphi 0, %s51
      %s69 = sphi 0, %s69
      %s71 = sphi 0, %s69
      %s72 = sphi 0, %s71
      %s86 = sphi 0, %s72
      %s90 = sphi 0, %s90
      %s92 = sphi 0, %s90
      %s93 = sphi 0, %s92
      %s107 = sphi 0, %s93
      %s111 = sphi 0, %s111
      %s113 = sphi 0, %s111
      %s114 = sphi 0, %s113
      %s128 = sphi 0, %s114
      %s134 = sphi 0, %s136
      %s137 = sphi 0, %s134
      %s138 = sphi 0, %s137
      %s154 = sphi 0, %s138
    $region4: #{tpu_custom_call.1} parent=1 // loop_header_branch
      %17 = sbr.rel (%p15) target = $region8
    $region5: #{tpu_custom_call.1} parent=1 // loop_body
      %s19 = ssub.s32 %s14, 1
      %s20 = ssub.s32 %s14, 2
      %s21 = sadd.s32 %s14, 1
      %s22 = ssub.s32 %s14, %s21
      %p23 = scmp.eq.s32.totalorder %s22, 0
      %s25 = sadd.s32 %s24, 1
      %s26 = scalar_select %p23, %s24, %s25
      %p29 = pneg %p23
      %p30 = scmp.eq.s32.totalorder %s14, 1
      %p31 = por %p29, %p30
      %p32 = scmp.ne.s32.totalorder %s24, %s27
      %p33 = scmp.eq.s32.totalorder %s14, 0
      %p34 = por %p32, %p33
      %p35 = scmp.ne.s32.totalorder %s24, %s27
      %p36 = scmp.eq.s32.totalorder %s19, 1
      %p37 = por %p35, %p36
      %p38 = scmp.ne.s32.totalorder %s27, %s28
      %p39 = scmp.eq.s32.totalorder %s19, 0
      %p40 = por %p38, %p39
      %p41 = scmp.ne.s32.totalorder %s27, %s28
      %p42 = scmp.eq.s32.totalorder %s20, 1
      %p43 = por %p41, %p42
      %p45 = scmp.ne.s32.totalorder %s28, %s44
      %p46 = scmp.eq.s32.totalorder %s20, 0
      %p47 = por %p45, %p46
      %s49 = sadd.s32 %s48, 1
      %p52 = scmp.eq.s32.totalorder %s14, 1
      %p53 = scmp.ne.s32.totalorder %s48, %s50
      %p54 = scmp.eq.s32.totalorder %s14, 0
      %p55 = por %p53, %p54
      %p56 = scmp.ne.s32.totalorder %s48, %s50
      %p57 = scmp.eq.s32.totalorder %s19, 1
      %p58 = por %p56, %p57
      %p59 = scmp.ne.s32.totalorder %s50, %s51
      %p60 = scmp.eq.s32.totalorder %s19, 0
      %p61 = por %p59, %p60
      %p62 = scmp.ne.s32.totalorder %s50, %s51
      %p63 = scmp.eq.s32.totalorder %s20, 1
      %p64 = por %p62, %p63
      %p66 = scmp.ne.s32.totalorder %s51, %s65
      %p67 = scmp.eq.s32.totalorder %s20, 0
      %p68 = por %p66, %p67
      %s70 = sadd.s32 %s69, 1
      %p73 = scmp.eq.s32.totalorder %s14, 1
      %p74 = scmp.ne.s32.totalorder %s69, %s71
      %p75 = scmp.eq.s32.totalorder %s14, 0
      %p76 = por %p74, %p75
      %p77 = scmp.ne.s32.totalorder %s69, %s71
      %p78 = scmp.eq.s32.totalorder %s19, 1
      %p79 = por %p77, %p78
      %p80 = scmp.ne.s32.totalorder %s71, %s72
      %p81 = scmp.eq.s32.totalorder %s19, 0
      %p82 = por %p80, %p81
      %p83 = scmp.ne.s32.totalorder %s71, %s72
      %p84 = scmp.eq.s32.totalorder %s20, 1
      %p85 = por %p83, %p84
      %p87 = scmp.ne.s32.totalorder %s72, %s86
      %p88 = scmp.eq.s32.totalorder %s20, 0
      %p89 = por %p87, %p88
      %s91 = sadd.s32 %s90, 1
      %p94 = scmp.eq.s32.totalorder %s14, 1
      %p95 = scmp.ne.s32.totalorder %s90, %s92
      %p96 = scmp.eq.s32.totalorder %s14, 0
      %p97 = por %p95, %p96
      %p98 = scmp.ne.s32.totalorder %s90, %s92
      %p99 = scmp.eq.s32.totalorder %s19, 1
      %p100 = por %p98, %p99
      %p101 = scmp.ne.s32.totalorder %s92, %s93
      %p102 = scmp.eq.s32.totalorder %s19, 0
      %p103 = por %p101, %p102
      %p104 = scmp.ne.s32.totalorder %s92, %s93
      %p105 = scmp.eq.s32.totalorder %s20, 1
      %p106 = por %p104, %p105
      %p108 = scmp.ne.s32.totalorder %s93, %s107
      %p109 = scmp.eq.s32.totalorder %s20, 0
      %p110 = por %p108, %p109
      %s112 = sadd.s32 %s111, 1
      %p115 = scmp.eq.s32.totalorder %s14, 1
      %p116 = scmp.ne.s32.totalorder %s111, %s113
      %p117 = scmp.eq.s32.totalorder %s14, 0
      %p118 = por %p116, %p117
      %p119 = scmp.ne.s32.totalorder %s111, %s113
      %p120 = scmp.eq.s32.totalorder %s19, 1
      %p121 = por %p119, %p120
      %p122 = scmp.ne.s32.totalorder %s113, %s114
      %p123 = scmp.eq.s32.totalorder %s19, 0
      %p124 = por %p122, %p123
      %p125 = scmp.ne.s32.totalorder %s113, %s114
      %p126 = scmp.eq.s32.totalorder %s20, 1
      %p127 = por %p125, %p126
      %p129 = scmp.ne.s32.totalorder %s114, %s128
      %p130 = scmp.eq.s32.totalorder %s20, 0
      %p131 = por %p129, %p130
      %s132 = ssub.s32 %s14, %s21
      %p133 = scmp.eq.s32.totalorder %s132, 0
      %s135 = sadd.s32 %s134, 1
      %s136 = scalar_select %p133, %s134, %s135
      %p139 = pneg %p133
      %p140 = scmp.eq.s32.totalorder %s14, 1
      %p141 = por %p139, %p140
      %p142 = scmp.ne.s32.totalorder %s134, %s137
      %p143 = scmp.eq.s32.totalorder %s14, 0
      %p144 = por %p142, %p143
      %p145 = scmp.ne.s32.totalorder %s134, %s137
      %p146 = scmp.eq.s32.totalorder %s19, 1
      %p147 = por %p145, %p146
      %p148 = scmp.ne.s32.totalorder %s137, %s138
      %p149 = scmp.eq.s32.totalorder %s19, 0
      %p150 = por %p148, %p149
      %p151 = scmp.ne.s32.totalorder %s137, %s138
      %p152 = scmp.eq.s32.totalorder %s20, 1
      %p153 = por %p151, %p152
      %p155 = scmp.ne.s32.totalorder %s138, %s154
      %p156 = scmp.eq.s32.totalorder %s20, 0
      %p157 = por %p155, %p156
      %p158 = scmp.le.s32.totalorder 1, %s14
      %p159 = scmp.lt.s32.totalorder %s14, 3
      %p160 = pnand %p158, %p159
      %p161 = pneg %p160
      // Predicated region
      $region9: #{tpu_custom_call.1} parent=5 // pred_check
        _
      $region10: #{tpu_custom_call.1} parent=5 // pred_check_branch
        %163 = sbr.rel (%p160) target = $region12
      $region11: #{tpu_custom_call.1} parent=5 // pred_region
        %s164 = ssub.s32 %s14, 1
        // Predicated region
        $region13: #{tpu_custom_call.1} parent=11 // pred_check
          %p165 = pneg %p61
        $region14: #{tpu_custom_call.1} parent=11 // pred_check_branch
          %167 = sbr.rel (%p165) target = $region16
        $region15: #{tpu_custom_call.1} parent=11 // pred_region
          _
        $region16: #{tpu_custom_call.1} parent=11 // pred_fallthru
          _
        // Predicated region
        $region17: #{tpu_custom_call.1} parent=11 // pred_check
          %p168 = pneg %p82
        $region18: #{tpu_custom_call.1} parent=11 // pred_check_branch
          %170 = sbr.rel (%p168) target = $region20
        $region19: #{tpu_custom_call.1} parent=11 // pred_region
          _
        $region20: #{tpu_custom_call.1} parent=11 // pred_fallthru
          _
        // Predicated region
        $region21: #{tpu_custom_call.1} parent=11 // pred_check
          %p171 = pneg %p103
        $region22: #{tpu_custom_call.1} parent=11 // pred_check_branch
          %173 = sbr.rel (%p171) target = $region24
        $region23: #{tpu_custom_call.1} parent=11 // pred_region
          _
        $region24: #{tpu_custom_call.1} parent=11 // pred_fallthru
          _
        // Predicated region
        $region25: #{tpu_custom_call.1} parent=11 // pred_check
          %p174 = pneg %p124
        $region26: #{tpu_custom_call.1} parent=11 // pred_check_branch
          %176 = sbr.rel (%p174) target = $region28
        $region27: #{tpu_custom_call.1} parent=11 // pred_region
          _
        $region28: #{tpu_custom_call.1} parent=11 // pred_fallthru
          _
      $region12: #{tpu_custom_call.1} parent=5 // pred_fallthru
        _
      %p177 = scmp.lt.s32.totalorder %s14, 2
      // Predicated region
      $region29: #{tpu_custom_call.1} parent=5 // pred_check
        %p178 = pneg %p177
      $region30: #{tpu_custom_call.1} parent=5 // pred_check_branch
        %180 = sbr.rel (%p178) target = $region32
      $region31: #{tpu_custom_call.1} parent=5 // pred_region
        // Predicated region
        $region33: #{tpu_custom_call.1} parent=31 // pred_check
          %p181 = pneg %p34
        $region34: #{tpu_custom_call.1} parent=31 // pred_check_branch
          %183 = sbr.rel (%p181) target = $region36
        $region35: #{tpu_custom_call.1} parent=31 // pred_region
          %s184 = smul.u32 16, %s14
          %p185 = scmp.lt.s32.totalorder %s184, 31
          %s186 = scalar_select %p185, %s184, 31
          %s187 = smul.addr %s186, 4
          %s188 = scalar_lea.vmem %s0, %s187
          %s189 = smul.u32 16, %s14
        $region36: #{tpu_custom_call.1} parent=31 // pred_fallthru
          _
      $region32: #{tpu_custom_call.1} parent=5 // pred_fallthru
        _
      %p190 = scmp.le.s32.totalorder 1, %s14
      %p191 = scmp.lt.s32.totalorder %s14, 3
      %p192 = pnand %p190, %p191
      %p193 = pneg %p192
      // Predicated region
      $region37: #{tpu_custom_call.1} parent=5 // pred_check
        _
      $region38: #{tpu_custom_call.1} parent=5 // pred_check_branch
        %195 = sbr.rel (%p192) target = $region40
      $region39: #{tpu_custom_call.1} parent=5 // pred_region
        %s196 = ssub.s32 %s14, 1
        %s197 = smul.u32 16, %s19
        %p198 = scmp.lt.s32.totalorder %s197, 31
        %s199 = scalar_select %p198, %s197, 31
        %s200 = smul.addr %s199, 4
        %s201 = scalar_lea.vmem %s0, %s200
        %p202 = pneg %p40
        %p203 = pneg %p37
        %p204 = pneg %p61
        %p205 = pneg %p58
        %p206 = pneg %p82
        %p207 = pneg %p79
        %p208 = pneg %p103
        %p209 = pneg %p100
        %p210 = pneg %p124
        %p211 = pneg %p121
        %p212 = pneg %p150
        %p213 = pneg %p147
        %s214 = sand.u32 %s137, 1
        %s215 = scalar_lea.sflag [#allocation3], %s214
        %s216 = sand.u32 %s137, 1
        %s217 = smul.addr %s216, 128
        %s218 = scalar_lea.vmem [#allocation2], %s217
        %s219 = smul.u32 16, %s19
        %p220 = scmp.lt.s32.totalorder %s219, 31
        %s221 = scalar_select %p220, %s219, 31
        %s222 = smul.addr %s221, 4
        %s223 = scalar_lea.vmem %s0, %s222
        %s224 = smul.u32 16, %s19
        %s225 = smul.u32 16, %s19
        %v227 = vld [vmem:[%s223] sm:$0xf]
        %v228 = vld [vmem:[%s223 + $0x4] sm:$0xf]
        %v229 = vld [vmem:[%s223 + $0x8] sm:$0xf]
        %v230 = vld [vmem:[%s223 + $0xc] sm:$0xf]
        %v231 = vld [vmem:[%s223 + $0x10] sm:$0xf]
        %v232 = vld [vmem:[%s223 + $0x14] sm:$0xf]
        %v233 = vld [vmem:[%s223 + $0x18] sm:$0xf]
        %v234 = vld [vmem:[%s223 + $0x1c] sm:$0xf]
        %v235 = vld [vmem:[%s223 + $0x20] sm:$0xf]
        %v236 = vld [vmem:[%s223 + $0x24] sm:$0xf]
        %v237 = vld [vmem:[%s223 + $0x28] sm:$0xf]
        %v238 = vld [vmem:[%s223 + $0x2c] sm:$0xf]
        %v239 = vld [vmem:[%s223 + $0x30] sm:$0xf]
        %v240 = vld [vmem:[%s223 + $0x34] sm:$0xf]
        %v241 = vld [vmem:[%s223 + $0x38] sm:$0xf]
        %v242 = vld [vmem:[%s223 + $0x3c] sm:$0xf]
        %v243 = vld [vmem:[%s1] sm:$0xf]
        %v244 = vld [vmem:[%s1 + $0x4] sm:$0xf]
        %v245 = vld [vmem:[%s1 + $0x8] sm:$0xf]
        %v246 = vld [vmem:[%s1 + $0xc] sm:$0xf]
        %v247 = vld [vmem:[%s2] sm:$0x1]
        %v249 = vperm.slane %v247, 0
        %v267 = vunpack.c.l.b16 %v227
        %v268 = vunpack.c.l.b16 %v228
        %v269 = vunpack.c.l.b16 %v229
        %v270 = vunpack.c.l.b16 %v230
        %v271 = vunpack.c.l.b16 %v231
        %v272 = vunpack.c.l.b16 %v232
        %v273 = vunpack.c.l.b16 %v233
        %v274 = vunpack.c.l.b16 %v234
        %v275 = vunpack.c.l.b16 %v235
        %v276 = vunpack.c.l.b16 %v236
        %v277 = vunpack.c.l.b16 %v237
        %v278 = vunpack.c.l.b16 %v238
        %v279 = vunpack.c.l.b16 %v239
        %v280 = vunpack.c.l.b16 %v240
        %v281 = vunpack.c.l.b16 %v241
        %v282 = vunpack.c.l.b16 %v242
        %v283 = vpack.c.b16 %v268, %v267
        %v284 = vpack.c.b16 %v270, %v269
        %v285 = vpack.c.b16 %v272, %v271
        %v286 = vpack.c.b16 %v274, %v273
        %v287 = vpack.c.b16 %v276, %v275
        %v288 = vpack.c.b16 %v278, %v277
        %v289 = vpack.c.b16 %v280, %v279
        %v290 = vpack.c.b16 %v282, %v281
        %v295 = vunpack.c.l.b16 %v243
        %v296 = vunpack.c.l.b16 %v244
        %v297 = vunpack.c.l.b16 %v245
        %v298 = vunpack.c.l.b16 %v246
        %v299 = vpack.c.b16 %v296, %v295
        %v300 = vpack.c.b16 %v298, %v297
        %vm303 = vcmask 261120
        %v305 = vsel %vm303, %v283, 0
        %v308 = vsel %vm303, %v284, 0
        %v311 = vsel %vm303, %v285, 0
        %v314 = vsel %vm303, %v286, 0
        %v317 = vsel %vm303, %v287, 0
        %v320 = vsel %vm303, %v288, 0
        %v323 = vsel %vm303, %v289, 0
        %v326 = vsel %vm303, %v290, 0
        %328 = vmatpush.bf16.msra.mxu0 0
        %329 = vmatpush.bf16.msra.mxu0 0
        %330 = vmatpush.bf16.msra.mxu0 0
        %331 = vmatpush.bf16.msra.mxu0 0
        %332 = vmatpush.bf16.msra.mxu0 0
        %333 = vmatpush.bf16.msra.mxu0 0
        %334 = vmatpush.bf16.msra.mxu0 %v300
        %335 = vmatpush.bf16.msra.mxu0 %v299
        %336 = vmatmul.bf16.gmra.mxu0 %v305
        %v337 = vpop.f32.mrf.mxu0
        %v338 = vadd.f32 %v249, %v337
        %v339 = vpop.f32.mrf.mxu0
        %v340 = vadd.f32 %v249, %v339
        %341 = vmatmul.bf16.gmra.mxu0 %v308
        %v342 = vpop.f32.mrf.mxu0
        %v343 = vadd.f32 %v249, %v342
        %v344 = vpop.f32.mrf.mxu0
        %v345 = vadd.f32 %v249, %v344
        %346 = vmatmul.bf16.gmra.mxu0 %v311
        %v347 = vpop.f32.mrf.mxu0
        %v348 = vadd.f32 %v249, %v347
        %v349 = vpop.f32.mrf.mxu0
        %v350 = vadd.f32 %v249, %v349
        %351 = vmatmul.bf16.gmra.mxu0 %v314
        %v352 = vpop.f32.mrf.mxu0
        %v353 = vadd.f32 %v249, %v352
        %v354 = vpop.f32.mrf.mxu0
        %v355 = vadd.f32 %v249, %v354
        %356 = vmatmul.bf16.gmra.mxu0 %v317
        %v357 = vpop.f32.mrf.mxu0
        %v358 = vadd.f32 %v249, %v357
        %v359 = vpop.f32.mrf.mxu0
        %v360 = vadd.f32 %v249, %v359
        %361 = vmatmul.bf16.gmra.mxu0 %v320
        %v362 = vpop.f32.mrf.mxu0
        %v363 = vadd.f32 %v249, %v362
        %v364 = vpop.f32.mrf.mxu0
        %v365 = vadd.f32 %v249, %v364
        %366 = vmatmul.bf16.gmra.mxu0 %v323
        %v367 = vpop.f32.mrf.mxu0
        %v368 = vadd.f32 %v249, %v367
        %v369 = vpop.f32.mrf.mxu0
        %v370 = vadd.f32 %v249, %v369
        %371 = vmatmul.bf16.gmra.mxu0 %v326
        %v372 = vpop.f32.mrf.mxu0
        %v373 = vadd.f32 %v249, %v372
        %v374 = vpop.f32.mrf.mxu0
        %v375 = vadd.f32 %v249, %v374
        %376 = vdwg.mxu0
        %v377 = vtanh.pop %v338
        %v378 = vtanh.pop %v340
        %v379 = vtanh.pop %v343
        %v380 = vtanh.pop %v345
        %v381 = vtanh.pop %v348
        %v382 = vtanh.pop %v350
        %v383 = vtanh.pop %v353
        %v384 = vtanh.pop %v355
        %v385 = vtanh.pop %v358
        %v386 = vtanh.pop %v360
        %v387 = vtanh.pop %v363
        %v388 = vtanh.pop %v365
        %v389 = vtanh.pop %v368
        %v390 = vtanh.pop %v370
        %v391 = vtanh.pop %v373
        %v392 = vtanh.pop %v375
        %v393 = vpack.c.bf16 %v378, %v377
        %v394 = vpack.c.bf16 %v380, %v379
        %v395 = vpack.c.bf16 %v382, %v381
        %v396 = vpack.c.bf16 %v384, %v383
        %v397 = vpack.c.bf16 %v386, %v385
        %v398 = vpack.c.bf16 %v388, %v387
        %v399 = vpack.c.bf16 %v390, %v389
        %v400 = vpack.c.bf16 %v392, %v391
        %v401 = vld [vmem:[%s3] sm:$0xf]
        %v402 = vld [vmem:[%s3 + $0x4] sm:$0xf]
        %v403 = vld [vmem:[%s3 + $0x8] sm:$0xf]
        %v404 = vld [vmem:[%s3 + $0xc] sm:$0xf]
        %v405 = vld [vmem:[%s3 + $0x10] sm:$0xf]
        %v406 = vld [vmem:[%s3 + $0x14] sm:$0xf]
        %v407 = vld [vmem:[%s3 + $0x18] sm:$0xf]
        %v408 = vld [vmem:[%s3 + $0x1c] sm:$0xf]
        %v409 = vld [vmem:[%s3 + $0x20] sm:$0xf]
        %v410 = vld [vmem:[%s3 + $0x24] sm:$0xf]
        %v411 = vld [vmem:[%s3 + $0x28] sm:$0xf]
        %v412 = vld [vmem:[%s3 + $0x2c] sm:$0xf]
        %v413 = vld [vmem:[%s3 + $0x30] sm:$0xf]
        %v414 = vld [vmem:[%s3 + $0x34] sm:$0xf]
        %v415 = vld [vmem:[%s3 + $0x38] sm:$0xf]
        %v416 = vld [vmem:[%s3 + $0x3c] sm:$0xf]
        %v417 = vld [vmem:[%s4] sm:$0x1]
        %v419 = vperm.slane %v417, 0
        %v437 = vunpack.c.l.b16 %v401
        %v438 = vunpack.c.l.b16 %v402
        %v439 = vunpack.c.l.b16 %v403
        %v440 = vunpack.c.l.b16 %v404
        %v441 = vunpack.c.l.b16 %v405
        %v442 = vunpack.c.l.b16 %v406
        %v443 = vunpack.c.l.b16 %v407
        %v444 = vunpack.c.l.b16 %v408
        %v445 = vunpack.c.l.b16 %v409
        %v446 = vunpack.c.l.b16 %v410
        %v447 = vunpack.c.l.b16 %v411
        %v448 = vunpack.c.l.b16 %v412
        %v449 = vunpack.c.l.b16 %v413
        %v450 = vunpack.c.l.b16 %v414
        %v451 = vunpack.c.l.b16 %v415
        %v452 = vunpack.c.l.b16 %v416
        %v453 = vpack.c.b16 %v438, %v437
        %v454 = vpack.c.b16 %v440, %v439
        %v455 = vpack.c.b16 %v442, %v441
        %v456 = vpack.c.b16 %v444, %v443
        %v457 = vpack.c.b16 %v446, %v445
        %v458 = vpack.c.b16 %v448, %v447
        %v459 = vpack.c.b16 %v450, %v449
        %v460 = vpack.c.b16 %v452, %v451
        %469 = vmatpush.bf16.msra.mxu0 %v460
        %470 = vmatpush.bf16.msra.mxu0 %v459
        %471 = vmatpush.bf16.msra.mxu0 %v458
        %472 = vmatpush.bf16.msra.mxu0 %v457
        %473 = vmatpush.bf16.msra.mxu0 %v456
        %474 = vmatpush.bf16.msra.mxu0 %v455
        %475 = vmatpush.bf16.msra.mxu0 %v454
        %476 = vmatpush.bf16.msra.mxu0 %v453
        %477 = vmatmul.bf16.gmra.mxu0 %v393
        %v478 = vpop.f32.mrf.mxu0
        %v479 = vadd.f32 %v419, %v478
        %v480 = vpop.f32.mrf.mxu0
        %v481 = vadd.f32 %v419, %v480
        %482 = vmatmul.bf16.gmra.mxu0 %v394
        %v483 = vpop.f32.mrf.mxu0
        %v484 = vadd.f32 %v419, %v483
        %v485 = vpop.f32.mrf.mxu0
        %v486 = vadd.f32 %v419, %v485
        %487 = vmatmul.bf16.gmra.mxu0 %v395
        %v488 = vpop.f32.mrf.mxu0
        %v489 = vadd.f32 %v419, %v488
        %v490 = vpop.f32.mrf.mxu0
        %v491 = vadd.f32 %v419, %v490
        %492 = vmatmul.bf16.gmra.mxu0 %v396
        %v493 = vpop.f32.mrf.mxu0
        %v494 = vadd.f32 %v419, %v493
        %v495 = vpop.f32.mrf.mxu0
        %v496 = vadd.f32 %v419, %v495
        %497 = vmatmul.bf16.gmra.mxu0 %v397
        %v498 = vpop.f32.mrf.mxu0
        %v499 = vadd.f32 %v419, %v498
        %v500 = vpop.f32.mrf.mxu0
        %v501 = vadd.f32 %v419, %v500
        %502 = vmatmul.bf16.gmra.mxu0 %v398
        %v503 = vpop.f32.mrf.mxu0
        %v504 = vadd.f32 %v419, %v503
        %v505 = vpop.f32.mrf.mxu0
        %v506 = vadd.f32 %v419, %v505
        %507 = vmatmul.bf16.gmra.mxu0 %v399
        %v508 = vpop.f32.mrf.mxu0
        %v509 = vadd.f32 %v419, %v508
        %v510 = vpop.f32.mrf.mxu0
        %v511 = vadd.f32 %v419, %v510
        %512 = vmatmul.bf16.gmra.mxu0 %v400
        %v513 = vpop.f32.mrf.mxu0
        %v514 = vadd.f32 %v419, %v513
        %v515 = vpop.f32.mrf.mxu0
        %v516 = vadd.f32 %v419, %v515
        %517 = vdwg.mxu0
        %v518 = vtanh.pop %v479
        %v519 = vtanh.pop %v481
        %v520 = vtanh.pop %v484
        %v521 = vtanh.pop %v486
        %v522 = vtanh.pop %v489
        %v523 = vtanh.pop %v491
        %v524 = vtanh.pop %v494
        %v525 = vtanh.pop %v496
        %v526 = vtanh.pop %v499
        %v527 = vtanh.pop %v501
        %v528 = vtanh.pop %v504
        %v529 = vtanh.pop %v506
        %v530 = vtanh.pop %v509
        %v531 = vtanh.pop %v511
        %v532 = vtanh.pop %v514
        %v533 = vtanh.pop %v516
        %534 = vst [vmem:[%s218] sm:$0xff] %v518
        %535 = vst [vmem:[%s218 + $0x8] sm:$0xff] %v519
        %536 = vst [vmem:[%s218 + $0x10] sm:$0xff] %v520
        %537 = vst [vmem:[%s218 + $0x18] sm:$0xff] %v521
        %538 = vst [vmem:[%s218 + $0x20] sm:$0xff] %v522
        %539 = vst [vmem:[%s218 + $0x28] sm:$0xff] %v523
        %540 = vst [vmem:[%s218 + $0x30] sm:$0xff] %v524
        %541 = vst [vmem:[%s218 + $0x38] sm:$0xff] %v525
        %542 = vst [vmem:[%s218 + $0x40] sm:$0xff] %v526
        %543 = vst [vmem:[%s218 + $0x48] sm:$0xff] %v527
        %544 = vst [vmem:[%s218 + $0x50] sm:$0xff] %v528
        %545 = vst [vmem:[%s218 + $0x58] sm:$0xff] %v529
        %546 = vst [vmem:[%s218 + $0x60] sm:$0xff] %v530
        %547 = vst [vmem:[%s218 + $0x68] sm:$0xff] %v531
        %548 = vst [vmem:[%s218 + $0x70] sm:$0xff] %v532
        %549 = vst [vmem:[%s218 + $0x78] sm:$0xff] %v533
        %s550 = sand.u32 %s137, 1
        %s551 = scalar_lea.sflag [#allocation3], %s550
        %s552 = sand.u32 %s137, 1
        %s553 = smul.addr %s552, 128
        %s554 = scalar_lea.vmem [#allocation2], %s553
        // Predicated region
        $region41: #{tpu_custom_call.1} parent=39 // pred_check
          %p555 = pneg %p147
        $region42: #{tpu_custom_call.1} parent=39 // pred_check_branch
          %557 = sbr.rel (%p555) target = $region44
        $region43: #{tpu_custom_call.1} parent=39 // pred_region
          %s558 = smul.u32 16, %s19
          %560 = vsyncadd %s551, 0
          %s561 = smul.addr %s558, 8
          %s562 = scalar_lea.hbm %s5, %s561
          %s563 = sshll.u32 %s554, 4
          %s564 = int_to_ptr.vmem [resolvable:$true] %s563
          %s565 = sshll.u32 %s562, 4
          %s566 = int_to_ptr.hbm [resolvable:$true] %s565
          %571 = dma.vmem_to_hbm [thread:$0]  %s564, 2048, %s566, %s551, 128, 128, 8
        $region44: #{tpu_custom_call.1} parent=39 // pred_fallthru
          _
      $region40: #{tpu_custom_call.1} parent=5 // pred_fallthru
        _
      %p572 = scmp.le.s32.totalorder 2, %s14
      // Predicated region
      $region45: #{tpu_custom_call.1} parent=5 // pred_check
        %p573 = pneg %p572
      $region46: #{tpu_custom_call.1} parent=5 // pred_check_branch
        %575 = sbr.rel (%p573) target = $region48
      $region47: #{tpu_custom_call.1} parent=5 // pred_region
        %s576 = ssub.s32 %s14, 2
        // Predicated region
        $region49: #{tpu_custom_call.1} parent=47 // pred_check
          %p577 = pneg %p153
        $region50: #{tpu_custom_call.1} parent=47 // pred_check_branch
          %579 = sbr.rel (%p577) target = $region52
        $region51: #{tpu_custom_call.1} parent=47 // pred_region
          %s580 = sand.u32 %s138, 1
          %s581 = scalar_lea.sflag [#allocation3], %s580
          %s582 = sand.u32 %s138, 1
          %s583 = smul.addr %s582, 128
          %s584 = scalar_lea.vmem [#allocation2], %s583
          %586 = dma.done %s581, 2048
        $region52: #{tpu_custom_call.1} parent=47 // pred_fallthru
          _
      $region48: #{tpu_custom_call.1} parent=5 // pred_fallthru
        _
    $region6: #{tpu_custom_call.1} parent=1 // loop_footer
      %s18 = sadd.s32 1, %s14
    $region7: #{tpu_custom_call.1} parent=1 // loop_footer_branch
      %13 = sbr.rel target = $region3
    $region8: #{tpu_custom_call.1} parent=1 // loop_exit
      _
    %587 = vsyncpa [#allocation3], 1
    %s588 = scalar_lea.sflag [#allocation3], 1
    %589 = vsyncpa %s588, 1

</llo_original>
